<compile_context>
chip_gen: v7x
topology: tpu7x:2x2x1
jax: 0.10.0
libtpu: 0.0.40
codegen_flags: <defaults>
</compile_context>

<pallas_src>
import functools

import jax
import jax.numpy as jnp
from jax import lax
from jax.experimental import pallas as pl
from jax.experimental.pallas import tpu as pltpu


# ----------------------------------------------------------------------------
# small helpers
# ----------------------------------------------------------------------------

def _round_up(x, m):
    return ((x + m - 1) // m) * m


def _pick_row_tile(m):
    for t in (512, 256, 128, 64, 32, 16, 8):
        if m % t == 0:
            return t
    return m


def _gelu(x):
    # TODO(synk): PyTorch default GELU is exact erf; tanh approximation used here.
    return 0.5 * x * (1.0 + jnp.tanh(0.7978845608028654 * (x + 0.044715 * x * x * x)))


# ----------------------------------------------------------------------------
# Pallas kernels
# ----------------------------------------------------------------------------

def _matmul_bias_kernel(a_ref, b_ref, bias_ref, o_ref, acc_ref, *, activation):
    """Tiled o = act(a @ b + bias); K is the innermost (arbitrary) grid axis."""
    @pl.when(pl.program_id(2) == 0)
    def _():
        acc_ref[...] = jnp.zeros_like(acc_ref)

    acc_ref[...] += jnp.dot(a_ref[...], b_ref[...],
                            preferred_element_type=jnp.float32)

    @pl.when(pl.program_id(2) == pl.num_programs(2) - 1)
    def _():
        acc = acc_ref[...] + bias_ref[...]          # bias (1, tn) broadcasts over rows
        if activation == "gelu":
            acc = _gelu(acc)
        o_ref[...] = acc.astype(o_ref.dtype)


def matmul_bias(a, b, bias2, activation="none"):
    """o = act(a @ b + bias).  a: (M, K) any float, b: (K, N) bf16, bias2: (1, N) f32."""
    M, K = a.shape
    Kb, N = b.shape
    assert K == Kb

    tm = min(256, _round_up(M, 8))
    tn = min(256, _round_up(N, 128))
    tk = min(512, _round_up(K, 128))
    Mp, Np, Kp = _round_up(M, tm), _round_up(N, tn), _round_up(K, tk)

    a = a.astype(jnp.bfloat16)
    b = b.astype(jnp.bfloat16)
    if (Mp, Kp) != (M, K):
        a = jnp.pad(a, ((0, Mp - M), (0, Kp - K)))
    if (Kp, Np) != (K, N):
        b = jnp.pad(b, ((0, Kp - K), (0, Np - N)))
    if Np != N:
        bias2 = jnp.pad(bias2, ((0, 0), (0, Np - N)))

    out = pl.pallas_call(
        functools.partial(_matmul_bias_kernel, activation=activation),
        grid=(Mp // tm, Np // tn, Kp // tk),
        out_shape=jax.ShapeDtypeStruct((Mp, Np), jnp.float32),
        in_specs=[
            pl.BlockSpec((tm, tk), lambda i, j, k: (i, k)),
            pl.BlockSpec((tk, tn), lambda i, j, k: (k, j)),
            pl.BlockSpec((1, tn), lambda i, j, k: (0, j)),
        ],
        out_specs=pl.BlockSpec((tm, tn), lambda i, j, k: (i, j)),
        scratch_shapes=[pltpu.VMEM((tm, tn), jnp.float32)],
        compiler_params=pltpu.CompilerParams(
            dimension_semantics=("parallel", "parallel", "arbitrary")),
    )(a, b, bias2)

    if (Mp, Np) != (M, N):
        out = out[:M, :N]
    return out


def _layernorm_kernel(x_ref, g_ref, b_ref, o_ref, *, eps):
    x = x_ref[...].astype(jnp.float32)
    mean = jnp.mean(x, axis=-1, keepdims=True)
    var = jnp.mean((x - mean) * (x - mean), axis=-1, keepdims=True)
    inv = lax.rsqrt(var + eps)
    o_ref[...] = ((x - mean) * inv * g_ref[...] + b_ref[...]).astype(o_ref.dtype)


def _layernorm_res_kernel(x_ref, r_ref, g_ref, b_ref, o_ref, *, eps):
    x = x_ref[...].astype(jnp.float32) + r_ref[...].astype(jnp.float32)
    mean = jnp.mean(x, axis=-1, keepdims=True)
    var = jnp.mean((x - mean) * (x - mean), axis=-1, keepdims=True)
    inv = lax.rsqrt(var + eps)
    o_ref[...] = ((x - mean) * inv * g_ref[...] + b_ref[...]).astype(o_ref.dtype)


def layernorm(x2d, gamma2, beta2, residual=None, eps=1e-5):
    """Row-tiled layernorm (optionally fused with a residual add).

    x2d/residual: (M, D); gamma2/beta2: (1, D) f32.
    """
    M, D = x2d.shape
    tm = _pick_row_tile(M)
    grid = (M // tm,)
    row_spec = pl.BlockSpec((tm, D), lambda i: (i, 0))
    vec_spec = pl.BlockSpec((1, D), lambda i: (0, 0))
    cp = pltpu.CompilerParams(dimension_semantics=("parallel",))

    if residual is None:
        return pl.pallas_call(
            functools.partial(_layernorm_kernel, eps=eps),
            grid=grid,
            out_shape=jax.ShapeDtypeStruct((M, D), jnp.float32),
            in_specs=[row_spec, vec_spec, vec_spec],
            out_specs=row_spec,
            compiler_params=cp,
        )(x2d.astype(jnp.float32), gamma2, beta2)

    return pl.pallas_call(
        functools.partial(_layernorm_res_kernel, eps=eps),
        grid=grid,
        out_shape=jax.ShapeDtypeStruct((M, D), jnp.float32),
        in_specs=[row_spec, row_spec, vec_spec, vec_spec],
        out_specs=row_spec,
        compiler_params=cp,
    )(x2d.astype(jnp.float32), residual.astype(jnp.float32), gamma2, beta2)


def _attention_kernel(q_ref, k_ref, v_ref, o_ref, p_ref, *, scale, heads, head_dim):
    """All heads of one batch element per grid step.

    q/k/v refs: (1, S, D) bf16 with D = heads * head_dim.
    o ref: (1, S, D) f32 (single lane-dense store); p ref: (1, H, S, S) f32.
    """
    q = q_ref[0]                                   # (S, D) bf16
    k = k_ref[0]
    v = v_ref[0]
    ctx_parts = []
    for h in range(heads):
        lo = h * head_dim
        qh = q[:, lo:lo + head_dim]
        kh = k[:, lo:lo + head_dim]
        vh = v[:, lo:lo + head_dim]
        # contract head_dim of both -> (S, S); no in-kernel transpose.
        s = lax.dot_general(qh, kh, (((1,), (1,)), ((), ())),
                            preferred_element_type=jnp.float32) * scale
        m = jnp.max(s, axis=-1, keepdims=True)
        e = jnp.exp(s - m)
        p = e * pl.reciprocal(jnp.sum(e, axis=-1, keepdims=True), approx=True)
        ctx = jnp.dot(p.astype(jnp.bfloat16), vh,
                      preferred_element_type=jnp.float32)        # (S, Dh) f32
        ctx_parts.append(ctx)
        p_ref[0, h, :, :] = p.astype(p_ref.dtype)
    o_ref[0] = jnp.concatenate(ctx_parts, axis=-1).astype(o_ref.dtype)


def mha_attention(q, k, v, heads, scale):
    """q/k/v: (B, S, D) bf16 -> (context (B, S, D) f32, probs (B, H, S, S) f32)."""
    B, S, D = q.shape
    Dh = D // heads
    spec = pl.BlockSpec((1, S, D), lambda b: (b, 0, 0))
    pspec = pl.BlockSpec((1, heads, S, S), lambda b: (b, 0, 0, 0))
    return pl.pallas_call(
        functools.partial(_attention_kernel, scale=scale, heads=heads, head_dim=Dh),
        grid=(B,),
        out_shape=(
            jax.ShapeDtypeStruct((B, S, D), jnp.float32),
            jax.ShapeDtypeStruct((B, heads, S, S), jnp.float32),
        ),
        in_specs=[spec, spec, spec],
        out_specs=(spec, pspec),
        compiler_params=pltpu.CompilerParams(dimension_semantics=("parallel",)),
    )(q, k, v)


# ----------------------------------------------------------------------------
# Model glue (im2col, reshapes, residuals)
# ----------------------------------------------------------------------------

def conv1d_gelu(x, conv):
    """PyTorch-style Conv1d (valid padding) + GELU via im2col + Pallas matmul.

    x: (B, Cin, L) -> (B, Lout, Cout)
    """
    B, Cin, L = x.shape
    K, stride, Cout = conv["kernel"], conv["stride"], conv["cout"]
    Lout = (L - K) // stride + 1
    idx = jnp.arange(Lout)[:, None] * stride + jnp.arange(K)[None, :]   # (Lout, K)
    patches = x[:, :, idx]                                              # (B, Cin, Lout, K)
    patches = jnp.transpose(patches, (0, 2, 1, 3)).reshape(B * Lout, Cin * K)
    out = matmul_bias(patches, conv["wmat"], conv["b"], activation="gelu")
    return out.reshape(B, Lout, Cout)


def make_params(key, conv_cfg, conv_in, hidden, heads, inter, n_layers):
    """Parameters pre-packed for the kernels: bf16 weights, (1, N) f32 biases,
    fused QKV weight, conv weights flattened to (Cin*K, Cout)."""
    def nrm(k, shape, s=0.02):
        return jax.random.normal(k, shape, dtype=jnp.float32) * s

    keys = iter(jax.random.split(key, 256))
    p = {"convs": [], "layers": []}
    cin = conv_in
    for (cout, ksz, stride) in conv_cfg:
        w = nrm(next(keys), (cout, cin, ksz))
        p["convs"].append({
            "wmat": w.reshape(cout, cin * ksz).T.astype(jnp.bfloat16),  # (Cin*K, Cout)
            "b": jnp.zeros((1, cout), jnp.float32),
            "kernel": ksz, "stride": stride, "cout": cout,
        })
        cin = cout
    conv_out = cin
    # TODO(synk): group/layer norm between feature-extractor convs omitted.
    p["fp_ln_g"] = jnp.ones((1, conv_out), jnp.float32)
    p["fp_ln_b"] = jnp.zeros((1, conv_out), jnp.float32)
    p["fp_w"] = nrm(next(keys), (conv_out, hidden)).astype(jnp.bfloat16)
    p["fp_b"] = jnp.zeros((1, hidden), jnp.float32)
    p["masked_spec_embed"] = nrm(next(keys), (hidden,), s=1.0)
    p["enc_ln_g"] = jnp.ones((1, hidden), jnp.float32)
    p["enc_ln_b"] = jnp.zeros((1, hidden), jnp.float32)
    for _ in range(n_layers):
        wq = nrm(next(keys), (hidden, hidden))
        wk = nrm(next(keys), (hidden, hidden))
        wv = nrm(next(keys), (hidden, hidden))
        lyr = {
            "wqkv": jnp.concatenate([wq, wk, wv], axis=1).astype(jnp.bfloat16),
            "bqkv": jnp.zeros((1, 3 * hidden), jnp.float32),
            "wo": nrm(next(keys), (hidden, hidden)).astype(jnp.bfloat16),
            "bo": jnp.zeros((1, hidden), jnp.float32),
            "ln1_g": jnp.ones((1, hidden), jnp.float32),
            "ln1_b": jnp.zeros((1, hidden), jnp.float32),
            "w1": nrm(next(keys), (hidden, inter)).astype(jnp.bfloat16),
            "b1": jnp.zeros((1, inter), jnp.float32),
            "w2": nrm(next(keys), (inter, hidden)).astype(jnp.bfloat16),
            "b2": jnp.zeros((1, hidden), jnp.float32),
            "ln2_g": jnp.ones((1, hidden), jnp.float32),
            "ln2_b": jnp.zeros((1, hidden), jnp.float32),
        }
        p["layers"].append(lyr)
    p["heads"] = heads
    p["hidden"] = hidden
    return p


def encoder_forward(params, inputs, mask=None):
    """inputs: (B, L) raw audio.  mask: optional bool (B, S) masked-time indices."""
    B, L = inputs.shape
    H = params["heads"]
    D = params["hidden"]
    Dh = D // H

    # --- conv feature extractor ------------------------------------------------
    x = inputs[:, None, :]                               # (B, 1, L) == NCW
    for conv in params["convs"]:
        y = conv1d_gelu(x, conv)                         # (B, Lout, Cout)
        x = jnp.transpose(y, (0, 2, 1))                  # back to (B, C, L')
    feats = jnp.transpose(x, (0, 2, 1))                  # (B, S, Cconv)
    _, S, Cconv = feats.shape

    # --- feature projection ------------------------------------------------------
    f2d = layernorm(feats.reshape(B * S, Cconv), params["fp_ln_g"], params["fp_ln_b"])
    h2d = matmul_bias(f2d, params["fp_w"], params["fp_b"])            # (B*S, D)
    hidden = h2d.reshape(B, S, D)

    # --- mask_time_indices: replace masked positions with learned embedding -----
    if mask is not None:
        hidden = jnp.where(mask[:, :, None],
                           params["masked_spec_embed"][None, None, :], hidden)

    # TODO(synk): Wav2Vec2's grouped positional conv embedding (kernel=128,
    # groups=16) is omitted in this synthetic version.

    # --- pre-encoder layer norm (dropout omitted at inference) -------------------
    hidden = layernorm(hidden.reshape(B * S, D),
                       params["enc_ln_g"], params["enc_ln_b"]).reshape(B, S, D)

    hidden_states = [hidden]
    attentions = []
    scale = float(Dh) ** -0.5

    for lyr in params["layers"]:
        h2d = hidden.reshape(B * S, D)

        # fused Q/K/V projection: one (D, 3D) matmul instead of three.
        qkv = matmul_bias(h2d, lyr["wqkv"], lyr["bqkv"])               # (B*S, 3D)
        qkv = qkv.reshape(B, S, 3, D).astype(jnp.bfloat16)
        q, k, v = qkv[:, :, 0, :], qkv[:, :, 1, :], qkv[:, :, 2, :]    # (B, S, D) bf16

        ctx, probs = mha_attention(q, k, v, H, scale)                  # (B,S,D), (B,H,S,S)
        attn_out = matmul_bias(ctx.reshape(B * S, D), lyr["wo"], lyr["bo"])

        # fused residual + layernorm (post-LN Wav2Vec2 layer)
        h2d = layernorm(attn_out, lyr["ln1_g"], lyr["ln1_b"], residual=h2d)

        ffn = matmul_bias(h2d, lyr["w1"], lyr["b1"], activation="gelu")
        ffn = matmul_bias(ffn, lyr["w2"], lyr["b2"])
        h2d = layernorm(ffn, lyr["ln2_g"], lyr["ln2_b"], residual=h2d)

        hidden = h2d.reshape(B, S, D)
        hidden_states.append(hidden)
        attentions.append(probs)

    return {
        "encoder_states": tuple(hidden_states[:-1]),
        "encoder_out": hidden_states[-1],
        "attentions": tuple(attentions),
    }


# ----------------------------------------------------------------------------
# main
# ----------------------------------------------------------------------------

if __name__ == "__main__":
    key = jax.random.PRNGKey(0)
    k_param, k_audio, k_mask = jax.random.split(key, 3)

    # Small synthetic config:
    #   raw audio length 170 -> conv(k=10,s=5) -> 33 -> conv(k=3,s=2) -> S=16
    B, L = 2, 170
    conv_cfg = [(32, 10, 5), (48, 3, 2)]     # (out_channels, kernel, stride)
    hidden, heads, inter, n_layers = 64, 4, 128, 2

    params = make_params(k_param, conv_cfg, 1, hidden, heads, inter, n_layers)
    audio = jax.random.normal(k_audio, (B, L), dtype=jnp.float32)
    S = 16
    mask = jax.random.bernoulli(k_mask, 0.2, (B, S))

    out = encoder_forward(params, audio, mask=mask)
    jax.block_until_ready(out["encoder_out"])
    jax.block_until_ready(out["attentions"])

    assert out["encoder_out"].shape == (B, S, hidden)
    assert len(out["encoder_states"]) == n_layers            # all hidden states but last
    assert all(a.shape == (B, heads, S, S) for a in out["attentions"])
    assert bool(jnp.all(jnp.isfinite(out["encoder_out"])))
    assert bool(jnp.all(jnp.isfinite(jnp.stack(out["attentions"]))))

    print("KERNEL_OK")
</pallas_src>

<mosaic_0001>
module attributes {stable_mosaic.version = 11 : i64} {
  func.func @_matmul_bias_kernel(%arg0: i32, %arg1: i32, %arg2: i32, %arg3: memref<72x128xbf16, #tpu.memory_space<vmem>>, %arg4: memref<128x128xbf16, #tpu.memory_space<vmem>>, %arg5: memref<1x128xf32, #tpu.memory_space<vmem>>, %arg6: memref<72x128xf32, #tpu.memory_space<vmem>>, %arg7: memref<72x128xf32, #tpu.memory_space<vmem>>) attributes {dimension_semantics = [#tpu.dimension_semantics<parallel>, #tpu.dimension_semantics<parallel>, #tpu.dimension_semantics<arbitrary>], iteration_bounds = array<i64: 1, 1, 1>, scalar_prefetch = 0 : i64, scratch_operands = 1 : i64, tpu.core_type = #tpu.core_type<tc>, window_params = [{transform_indices = @transform_0, window_bounds = array<i64: 72, 128>}, {transform_indices = @transform_1, window_bounds = array<i64: 128, 128>}, {transform_indices = @transform_2, window_bounds = array<i64: 1, 128>}, {transform_indices = @transform_3, window_bounds = array<i64: 72, 128>}]} {
    %c0_i32 = arith.constant 0 : i32
    %0 = arith.cmpi eq, %arg2, %c0_i32 : i32
    %1 = arith.extui %0 : i1 to i32
    %c0_i32_0 = arith.constant 0 : i32
    %2 = arith.cmpi ne, %1, %c0_i32_0 : i32
    scf.if %2 {
      %cst_10 = arith.constant 0.000000e+00 : f32
      %12 = vector.broadcast %cst_10 : f32 to vector<72x128xf32>
      %c0_11 = arith.constant 0 : index
      %c0_12 = arith.constant 0 : index
      %13 = vector.load %arg7[%c0_11, %c0_12] : memref<72x128xf32, #tpu.memory_space<vmem>>, vector<72x128xf32>
      tpu.vector_store %arg7[%c0_11, %c0_12], %12 {strides = array<i32>} : memref<72x128xf32, #tpu.memory_space<vmem>>, vector<72x128xf32>,
    } else {
    }
    %c0 = arith.constant 0 : index
    %c0_1 = arith.constant 0 : index
    %3 = vector.load %arg7[%c0, %c0_1] : memref<72x128xf32, #tpu.memory_space<vmem>>, vector<72x128xf32>
    %c0_2 = arith.constant 0 : index
    %c0_3 = arith.constant 0 : index
    %4 = vector.load %arg3[%c0_2, %c0_3] : memref<72x128xbf16, #tpu.memory_space<vmem>>, vector<72x128xbf16>
    %c0_4 = arith.constant 0 : index
    %c0_5 = arith.constant 0 : index
    %5 = vector.load %arg4[%c0_4, %c0_5] : memref<128x128xbf16, #tpu.memory_space<vmem>>, vector<128x128xbf16>
    %cst = arith.constant dense<0.000000e+00> : vector<72x128xf32>
    %6 = tpu.matmul %4, %5, %cst {dimension_numbers = #tpu.dot_dimension_numbers<[1], [0], [0], [1], [0, 0, 1, 1], [], []>} : vector<72x128xbf16>, vector<128x128xbf16>, vector<72x128xf32> -> vector<72x128xf32>
    %7 = arith.addf %3, %6 : vector<72x128xf32>
    %c0_6 = arith.constant 0 : index
    %c0_7 = arith.constant 0 : index
    %8 = vector.load %arg7[%c0_6, %c0_7] : memref<72x128xf32, #tpu.memory_space<vmem>>, vector<72x128xf32>
    tpu.vector_store %arg7[%c0_6, %c0_7], %7 {strides = array<i32>} : memref<72x128xf32, #tpu.memory_space<vmem>>, vector<72x128xf32>,
    %c0_i32_8 = arith.constant 0 : i32
    %9 = arith.cmpi eq, %arg2, %c0_i32_8 : i32
    %10 = arith.extui %9 : i1 to i32
    %c0_i32_9 = arith.constant 0 : i32
    %11 = arith.cmpi ne, %10, %c0_i32_9 : i32
    scf.if %11 {
      %c0_10 = arith.constant 0 : index
      %c0_11 = arith.constant 0 : index
      %12 = vector.load %arg7[%c0_10, %c0_11] : memref<72x128xf32, #tpu.memory_space<vmem>>, vector<72x128xf32>
      %c0_12 = arith.constant 0 : index
      %c0_13 = arith.constant 0 : index
      %13 = vector.load %arg5[%c0_12, %c0_13] : memref<1x128xf32, #tpu.memory_space<vmem>>, vector<1x128xf32>
      %14 = vector.broadcast %13 : vector<1x128xf32> to vector<72x128xf32>
      %15 = arith.addf %12, %14 : vector<72x128xf32>
      %cst_14 = arith.constant 5.000000e-01 : f32
      %16 = vector.broadcast %cst_14 : f32 to vector<72x128xf32>
      %17 = arith.mulf %16, %15 : vector<72x128xf32>
      %cst_15 = arith.constant 4.471500e-02 : f32
      %18 = vector.broadcast %cst_15 : f32 to vector<72x128xf32>
      %19 = arith.mulf %18, %15 : vector<72x128xf32>
      %20 = arith.mulf %19, %15 : vector<72x128xf32>
      %21 = arith.mulf %20, %15 : vector<72x128xf32>
      %22 = arith.addf %15, %21 : vector<72x128xf32>
      %cst_16 = arith.constant 0.797884583 : f32
      %23 = vector.broadcast %cst_16 : f32 to vector<72x128xf32>
      %24 = arith.mulf %23, %22 : vector<72x128xf32>
      %25 = math.tanh %24 : vector<72x128xf32>
      %cst_17 = arith.constant 1.000000e+00 : f32
      %26 = vector.broadcast %cst_17 : f32 to vector<72x128xf32>
      %27 = arith.addf %26, %25 : vector<72x128xf32>
      %28 = arith.mulf %17, %27 : vector<72x128xf32>
      %c0_18 = arith.constant 0 : index
      %c0_19 = arith.constant 0 : index
      %29 = vector.load %arg6[%c0_18, %c0_19] : memref<72x128xf32, #tpu.memory_space<vmem>>, vector<72x128xf32>
      tpu.vector_store %arg6[%c0_18, %c0_19], %28 {strides = array<i32>} : memref<72x128xf32, #tpu.memory_space<vmem>>, vector<72x128xf32>,
    } else {
    }
    return
  }
  func.func @transform_0(%arg0: i32, %arg1: i32, %arg2: i32) -> (i32, i32) {
    %c0_i32 = arith.constant 0 : i32
    return %arg0, %arg2 : i32, i32
  }
  func.func @transform_1(%arg0: i32, %arg1: i32, %arg2: i32) -> (i32, i32) {
    %c0_i32 = arith.constant 0 : i32
    return %arg2, %arg1 : i32, i32
  }
  func.func @transform_2(%arg0: i32, %arg1: i32, %arg2: i32) -> (i32, i32) {
    %c0_i32 = arith.constant 0 : i32
    %c0_i32_0 = arith.constant 0 : i32
    return %c0_i32, %arg1 : i32, i32
  }
  func.func @transform_3(%arg0: i32, %arg1: i32, %arg2: i32) -> (i32, i32) {
    %c0_i32 = arith.constant 0 : i32
    return %arg0, %arg1 : i32, i32
  }
}

</mosaic_0001>

<llo_original>
// kernel: tpu_custom_call.1
$region0: #{tpu_custom_call.1}
  #allocation0 [shape = 'u32[]', space=smem, size = 0x4, offset = 0x4, fixed_abs, tag = 'smem constant byte address 0x4 - core index']
  #allocation1 [shape = 'u32[144,128]{1,0:T(1,128)}', space=vmem, size = 0x12000, scoped, tag = 'internal scratch']
  #allocation2 [shape = 'f32[72,128]{1,0:T(8,128)}', space=vmem, size = 0x9000, scoped, tag = 'scratch operand']
  %s0 = inlined_call_operand.hbm [shape: bf16[72,128], index: 0, kind: input, shape index: {}]
  %s1 = inlined_call_operand.hbm [shape: bf16[128,128], index: 1, kind: input, shape index: {}]
  %s2 = inlined_call_operand.vmem [shape: f32[1,128], index: 2, kind: input, shape index: {}]
  %s3 = inlined_call_operand.hbm [shape: f32[72,128], index: 3, kind: output, shape index: {}]
  %s4 = sld [smem:[#allocation0]]
  $region38: #{tpu_custom_call.1} parent=0
    _
  %s6 = ssub.s32 1, %s4
  %s7 = scalar_select 0, %s6, %s4
  $region1: #{tpu_custom_call.1} parent=0
    #allocation3 [shape = 'u8[18432]{0}', space=vmem, size = 0x4800, scoped, tag = 'input window, operand 0, single buffered']
    #allocation4 [shape = 's32[1]{0}', space=sflag, size = 0x4, scoped, tag = 'scoped memory for tpu_custom_call.1']
    #allocation5 [shape = 's32[1]{0}', space=sflag, size = 0x4, scoped, tag = 'scoped memory for tpu_custom_call.1']
    #allocation6 [shape = 'u8[32768]{0}', space=vmem, size = 0x8000, scoped, tag = 'input window, operand 1, single buffered']
    #allocation7 [shape = 's32[1]{0}', space=sflag, size = 0x4, scoped, tag = 'scoped memory for tpu_custom_call.1']
    #allocation8 [shape = 'u8[36864]{0}', space=vmem, size = 0x9000, scoped, tag = 'output window, operand 0, single buffered']
    %8 = vsyncpa [#allocation4], 0
    %9 = vsyncpa [#allocation7], 0
    %10 = vsyncpa [#allocation5], 0
    // Predicated region
    $region2: #{tpu_custom_call.1} parent=1 // pred_check
      _
    $region3: #{tpu_custom_call.1} parent=1 // pred_check_branch
      %12 = sbr.rel (0) target = $region5
    $region4: #{tpu_custom_call.1} parent=1 // pred_region
      %s14 = ssub.s32 576, 576
      %15 = vsyncadd [#allocation4], %s14
      %s16 = sshll.u32 [#allocation3], 4
      %s17 = int_to_ptr.vmem [resolvable:$true] %s16
      %22 = dma.hbm_to_vmem [thread:$0]  %s0, 576, %s17, [#allocation4], 64, 64, 4
    $region5: #{tpu_custom_call.1} parent=1 // pred_fallthru
      _
    // Predicated region
    $region6: #{tpu_custom_call.1} parent=1 // pred_check
      _
    $region7: #{tpu_custom_call.1} parent=1 // pred_check_branch
      %24 = sbr.rel (0) target = $region9
    $region8: #{tpu_custom_call.1} parent=1 // pred_region
      %s26 = ssub.s32 1024, 1024
      %27 = vsyncadd [#allocation7], %s26
      %s28 = sshll.u32 [#allocation6], 4
      %s29 = int_to_ptr.vmem [resolvable:$true] %s28
      %34 = dma.hbm_to_vmem [thread:$0]  %s1, 1024, %s29, [#allocation7], 64, 64, 4
    $region9: #{tpu_custom_call.1} parent=1 // pred_fallthru
      _
    // Predicated region
    $region10: #{tpu_custom_call.1} parent=1 // pred_check
      _
    $region11: #{tpu_custom_call.1} parent=1 // pred_check_branch
      %36 = sbr.rel (0) target = $region13
    $region12: #{tpu_custom_call.1} parent=1 // pred_region
      _
    $region13: #{tpu_custom_call.1} parent=1 // pred_fallthru
      _
    // Predicated region
    $region14: #{tpu_custom_call.1} parent=1 // pred_check
      _
    $region15: #{tpu_custom_call.1} parent=1 // pred_check_branch
      %38 = sbr.rel (0) target = $region17
    $region16: #{tpu_custom_call.1} parent=1 // pred_region
      %39 = dma.done [#allocation4], 576
    $region17: #{tpu_custom_call.1} parent=1 // pred_fallthru
      _
    // Predicated region
    $region18: #{tpu_custom_call.1} parent=1 // pred_check
      _
    $region19: #{tpu_custom_call.1} parent=1 // pred_check_branch
      %41 = sbr.rel (0) target = $region21
    $region20: #{tpu_custom_call.1} parent=1 // pred_region
      %42 = dma.done [#allocation7], 1024
    $region21: #{tpu_custom_call.1} parent=1 // pred_fallthru
      _
    %p44 = scmp.eq.s32.totalorder 0, 0
    // Predicated region
    $region22: #{tpu_custom_call.1} parent=1 // pred_check
      %p45 = pneg %p44
    $region23: #{tpu_custom_call.1} parent=1 // pred_check_branch
      %47 = sbr.rel (%p45) target = $region25
    $region24: #{tpu_custom_call.1} parent=1 // pred_region
      %48 = vst [vmem:[#allocation2] sm:$0xff] 0.0
      %49 = vst [vmem:[#allocation2 + $0x8] sm:$0xff] 0.0
      %50 = vst [vmem:[#allocation2 + $0x10] sm:$0xff] 0.0
      %51 = vst [vmem:[#allocation2 + $0x18] sm:$0xff] 0.0
      %52 = vst [vmem:[#allocation2 + $0x20] sm:$0xff] 0.0
      %53 = vst [vmem:[#allocation2 + $0x28] sm:$0xff] 0.0
      %54 = vst [vmem:[#allocation2 + $0x30] sm:$0xff] 0.0
      %55 = vst [vmem:[#allocation2 + $0x38] sm:$0xff] 0.0
      %56 = vst [vmem:[#allocation2 + $0x40] sm:$0xff] 0.0
    $region25: #{tpu_custom_call.1} parent=1 // pred_fallthru
      _
    %v57 = vld [vmem:[#allocation2] sm:$0xff]
    %v58 = vld [vmem:[#allocation2 + $0x8] sm:$0xff]
    %v59 = vld [vmem:[#allocation2 + $0x10] sm:$0xff]
    %v60 = vld [vmem:[#allocation2 + $0x18] sm:$0xff]
    %v61 = vld [vmem:[#allocation2 + $0x20] sm:$0xff]
    %v62 = vld [vmem:[#allocation2 + $0x28] sm:$0xff]
    %v63 = vld [vmem:[#allocation2 + $0x30] sm:$0xff]
    %v64 = vld [vmem:[#allocation2 + $0x38] sm:$0xff]
    %v65 = vld [vmem:[#allocation2 + $0x40] sm:$0xff]
    %v66 = vld [vmem:[#allocation3] sm:$0xf]
    %v67 = vld [vmem:[#allocation3 + $0x4] sm:$0xf]
    %v68 = vld [vmem:[#allocation3 + $0x8] sm:$0xf]
    %v69 = vld [vmem:[#allocation3 + $0xc] sm:$0xf]
    %v70 = vld [vmem:[#allocation3 + $0x10] sm:$0xf]
    %v71 = vld [vmem:[#allocation3 + $0x14] sm:$0xf]
    %v72 = vld [vmem:[#allocation3 + $0x18] sm:$0xf]
    %v73 = vld [vmem:[#allocation3 + $0x1c] sm:$0xf]
    %v74 = vld [vmem:[#allocation3 + $0x20] sm:$0xf]
    %v75 = vld [vmem:[#allocation6] sm:$0xf]
    %v76 = vld [vmem:[#allocation6 + $0x4] sm:$0xf]
    %v77 = vld [vmem:[#allocation6 + $0x8] sm:$0xf]
    %v78 = vld [vmem:[#allocation6 + $0xc] sm:$0xf]
    %v79 = vld [vmem:[#allocation6 + $0x10] sm:$0xf]
    %v80 = vld [vmem:[#allocation6 + $0x14] sm:$0xf]
    %v81 = vld [vmem:[#allocation6 + $0x18] sm:$0xf]
    %v82 = vld [vmem:[#allocation6 + $0x1c] sm:$0xf]
    %v83 = vld [vmem:[#allocation6 + $0x20] sm:$0xf]
    %v84 = vld [vmem:[#allocation6 + $0x24] sm:$0xf]
    %v85 = vld [vmem:[#allocation6 + $0x28] sm:$0xf]
    %v86 = vld [vmem:[#allocation6 + $0x2c] sm:$0xf]
    %v87 = vld [vmem:[#allocation6 + $0x30] sm:$0xf]
    %v88 = vld [vmem:[#allocation6 + $0x34] sm:$0xf]
    %v89 = vld [vmem:[#allocation6 + $0x38] sm:$0xf]
    %v90 = vld [vmem:[#allocation6 + $0x3c] sm:$0xf]
    %v100 = vunpack.c.l.b16 %v66
    %v101 = vunpack.c.l.b16 %v67
    %v102 = vunpack.c.l.b16 %v68
    %v103 = vunpack.c.l.b16 %v69
    %v104 = vunpack.c.l.b16 %v70
    %v105 = vunpack.c.l.b16 %v71
    %v106 = vunpack.c.l.b16 %v72
    %v107 = vunpack.c.l.b16 %v73
    %v108 = vunpack.c.l.b16 %v74
    %v109 = vpack.c.b16 %v101, %v100
    %v110 = vpack.c.b16 %v103, %v102
    %v111 = vpack.c.b16 %v105, %v104
    %v112 = vpack.c.b16 %v107, %v106
    %v113 = vpack.c.b16 %v108, %v108
    %v135 = vunpack.c.l.b16 %v75
    %v136 = vunpack.c.l.b16 %v76
    %v137 = vunpack.c.l.b16 %v77
    %v138 = vunpack.c.l.b16 %v78
    %v139 = vunpack.c.l.b16 %v79
    %v140 = vunpack.c.l.b16 %v80
    %v141 = vunpack.c.l.b16 %v81
    %v142 = vunpack.c.l.b16 %v82
    %v143 = vunpack.c.l.b16 %v83
    %v144 = vunpack.c.l.b16 %v84
    %v145 = vunpack.c.l.b16 %v85
    %v146 = vunpack.c.l.b16 %v86
    %v147 = vunpack.c.l.b16 %v87
    %v148 = vunpack.c.l.b16 %v88
    %v149 = vunpack.c.l.b16 %v89
    %v150 = vunpack.c.l.b16 %v90
    %v151 = vpack.c.b16 %v136, %v135
    %v152 = vpack.c.b16 %v138, %v137
    %v153 = vpack.c.b16 %v140, %v139
    %v154 = vpack.c.b16 %v142, %v141
    %v155 = vpack.c.b16 %v144, %v143
    %v156 = vpack.c.b16 %v146, %v145
    %v157 = vpack.c.b16 %v148, %v147
    %v158 = vpack.c.b16 %v150, %v149
    %167 = vmatprep.subr.bf16.mxu0 0
    %168 = vmatpush1.bf16.msra.mxu0 %v151
    %169 = vmatprep.subr.bf16.mxu0 0
    %170 = vmatpush1.bf16.msra.mxu0 %v152
    %171 = vmatprep.subr.bf16.mxu0 0
    %172 = vmatpush1.bf16.msra.mxu0 %v153
    %173 = vmatprep.subr.bf16.mxu0 0
    %174 = vmatpush1.bf16.msra.mxu0 %v154
    %175 = vmatprep.subr.bf16.mxu0 0
    %176 = vmatpush1.bf16.msra.mxu0 %v155
    %177 = vmatprep.subr.bf16.mxu0 0
    %178 = vmatpush1.bf16.msra.mxu0 %v156
    %179 = vmatprep.subr.bf16.mxu0 0
    %180 = vmatpush1.bf16.msra.mxu0 %v157
    %181 = vmatprep.subr.bf16.mxu0 0
    %182 = vmatpush1.bf16.msra.mxu0 %v158
    %183 = vmatprep.subr.bf16.mxu0 0
    %184 = vmatpush1.bf16.msra.mxu0 0
    %185 = vmatprep.subr.bf16.mxu0 0
    %186 = vmatpush1.bf16.msra.mxu0 0
    %187 = vmatprep.subr.bf16.mxu0 0
    %188 = vmatpush1.bf16.msra.mxu0 0
    %189 = vmatprep.subr.bf16.mxu0 0
    %190 = vmatpush1.bf16.msra.mxu0 0
    %191 = vmatprep.subr.bf16.mxu0 0
    %192 = vmatpush1.bf16.msra.mxu0 0
    %193 = vmatprep.subr.bf16.mxu0 0
    %194 = vmatpush1.bf16.msra.mxu0 0
    %195 = vmatprep.subr.bf16.mxu0 0
    %196 = vmatpush1.bf16.msra.mxu0 0
    %197 = vmatprep.subr.bf16.mxu0 0
    %198 = vmatpush1.bf16.msra.mxu0 0
    %199 = vmatprep.mubr.bf16.mxu0 0
    %200 = vmatmul.mubr.bf16.gmra.mrb[0].mxu0 %v109
    %v201 = vpop.f32.mrb[0].mxu0
    %v202 = vadd.f32 0.0, %v201
    %v203 = vpop.f32.mrb[0].mxu0
    %v204 = vpop.f32.mrb[0].mxu0
    %v205 = vadd.f32 0.0, %v204
    %v206 = vpop.f32.mrb[0].mxu0
    %207 = vmatprep.mubr.bf16.mxu0 0
    %208 = vmatmul.mubr.bf16.gmra.mrb[0].mxu0 %v110
    %v209 = vpop.f32.mrb[0].mxu0
    %v210 = vadd.f32 0.0, %v209
    %v211 = vpop.f32.mrb[0].mxu0
    %v212 = vpop.f32.mrb[0].mxu0
    %v213 = vadd.f32 0.0, %v212
    %v214 = vpop.f32.mrb[0].mxu0
    %215 = vmatprep.mubr.bf16.mxu0 0
    %216 = vmatmul.mubr.bf16.gmra.mrb[0].mxu0 %v111
    %v217 = vpop.f32.mrb[0].mxu0
    %v218 = vadd.f32 0.0, %v217
    %v219 = vpop.f32.mrb[0].mxu0
    %v220 = vpop.f32.mrb[0].mxu0
    %v221 = vadd.f32 0.0, %v220
    %v222 = vpop.f32.mrb[0].mxu0
    %223 = vmatprep.mubr.bf16.mxu0 0
    %224 = vmatmul.mubr.bf16.gmra.mrb[0].mxu0 %v112
    %v225 = vpop.f32.mrb[0].mxu0
    %v226 = vadd.f32 0.0, %v225
    %v227 = vpop.f32.mrb[0].mxu0
    %v228 = vpop.f32.mrb[0].mxu0
    %v229 = vadd.f32 0.0, %v228
    %v230 = vpop.f32.mrb[0].mxu0
    %231 = vmatprep.mubr.bf16.mxu0 0
    %232 = vmatmul.mubr.bf16.gmra.mrb[0].mxu0 %v113
    %v233 = vpop.f32.mrb[0].mxu0
    %v234 = vadd.f32 0.0, %v233
    %v235 = vpop.f32.mrb[0].mxu0
    %v236 = vpop.f32.mrb[0].mxu0
    %v237 = vpop.f32.mrb[0].mxu0
    %238 = vdwg.mxu0
    %v239 = vadd.f32 %v57, %v202
    %v240 = vadd.f32 %v58, %v205
    %v241 = vadd.f32 %v59, %v210
    %v242 = vadd.f32 %v60, %v213
    %v243 = vadd.f32 %v61, %v218
    %v244 = vadd.f32 %v62, %v221
    %v245 = vadd.f32 %v63, %v226
    %v246 = vadd.f32 %v64, %v229
    %v247 = vadd.f32 %v65, %v234
    %248 = vst [vmem:[#allocation2] sm:$0xff] %v239
    %249 = vst [vmem:[#allocation2 + $0x8] sm:$0xff] %v240
    %250 = vst [vmem:[#allocation2 + $0x10] sm:$0xff] %v241
    %251 = vst [vmem:[#allocation2 + $0x18] sm:$0xff] %v242
    %252 = vst [vmem:[#allocation2 + $0x20] sm:$0xff] %v243
    %253 = vst [vmem:[#allocation2 + $0x28] sm:$0xff] %v244
    %254 = vst [vmem:[#allocation2 + $0x30] sm:$0xff] %v245
    %255 = vst [vmem:[#allocation2 + $0x38] sm:$0xff] %v246
    %256 = vst [vmem:[#allocation2 + $0x40] sm:$0xff] %v247
    // Predicated region
    $region26: #{tpu_custom_call.1} parent=1 // pred_check
      %p257 = pneg %p44
    $region27: #{tpu_custom_call.1} parent=1 // pred_check_branch
      %259 = sbr.rel (%p257) target = $region29
    $region28: #{tpu_custom_call.1} parent=1 // pred_region
      %v260 = vld [vmem:[#allocation2] sm:$0xff]
      %v261 = vld [vmem:[#allocation2 + $0x8] sm:$0xff]
      %v262 = vld [vmem:[#allocation2 + $0x10] sm:$0xff]
      %v263 = vld [vmem:[#allocation2 + $0x18] sm:$0xff]
      %v264 = vld [vmem:[#allocation2 + $0x20] sm:$0xff]
      %v265 = vld [vmem:[#allocation2 + $0x28] sm:$0xff]
      %v266 = vld [vmem:[#allocation2 + $0x30] sm:$0xff]
      %v267 = vld [vmem:[#allocation2 + $0x38] sm:$0xff]
      %v268 = vld [vmem:[#allocation2 + $0x40] sm:$0xff]
      %v269 = vld [vmem:[%s2] sm:$0x1]
      %v271 = vlaneseq
      %v272 = vshrl.u32 %v271, 7
      %v273 = vsub.s32 0, %v272
      %v274 = vrot.slane %v269, %v273
      %v276 = vadd.f32 %v260, %v274
      %v277 = vadd.f32 %v261, %v274
      %v278 = vadd.f32 %v262, %v274
      %v279 = vadd.f32 %v263, %v274
      %v280 = vadd.f32 %v264, %v274
      %v281 = vadd.f32 %v265, %v274
      %v282 = vadd.f32 %v266, %v274
      %v283 = vadd.f32 %v267, %v274
      %v284 = vadd.f32 %v268, %v274
      %v285 = vmul.f32 %v276, 0.5
      %v286 = vmul.f32 %v277, 0.5
      %v287 = vmul.f32 %v278, 0.5
      %v288 = vmul.f32 %v279, 0.5
      %v289 = vmul.f32 %v280, 0.5
      %v290 = vmul.f32 %v281, 0.5
      %v291 = vmul.f32 %v282, 0.5
      %v292 = vmul.f32 %v283, 0.5
      %v293 = vmul.f32 %v284, 0.5
      %v294 = vmul.f32 %v276, 0.044715
      %v295 = vmul.f32 %v277, 0.044715
      %v296 = vmul.f32 %v278, 0.044715
      %v297 = vmul.f32 %v279, 0.044715
      %v298 = vmul.f32 %v280, 0.044715
      %v299 = vmul.f32 %v281, 0.044715
      %v300 = vmul.f32 %v282, 0.044715
      %v301 = vmul.f32 %v283, 0.044715
      %v302 = vmul.f32 %v284, 0.044715
      %v303 = vmul.f32 %v294, %v276
      %v304 = vmul.f32 %v295, %v277
      %v305 = vmul.f32 %v296, %v278
      %v306 = vmul.f32 %v297, %v279
      %v307 = vmul.f32 %v298, %v280
      %v308 = vmul.f32 %v299, %v281
      %v309 = vmul.f32 %v300, %v282
      %v310 = vmul.f32 %v301, %v283
      %v311 = vmul.f32 %v302, %v284
      %v312 = vmul.f32 %v303, %v276
      %v313 = vmul.f32 %v304, %v277
      %v314 = vmul.f32 %v305, %v278
      %v315 = vmul.f32 %v306, %v279
      %v316 = vmul.f32 %v307, %v280
      %v317 = vmul.f32 %v308, %v281
      %v318 = vmul.f32 %v309, %v282
      %v319 = vmul.f32 %v310, %v283
      %v320 = vmul.f32 %v311, %v284
      %v321 = vadd.f32 %v276, %v312
      %v322 = vadd.f32 %v277, %v313
      %v323 = vadd.f32 %v278, %v314
      %v324 = vadd.f32 %v279, %v315
      %v325 = vadd.f32 %v280, %v316
      %v326 = vadd.f32 %v281, %v317
      %v327 = vadd.f32 %v282, %v318
      %v328 = vadd.f32 %v283, %v319
      %v329 = vadd.f32 %v284, %v320
      %v330 = vmul.f32 %v321, 0.7978846
      %v331 = vmul.f32 %v322, 0.7978846
      %v332 = vmul.f32 %v323, 0.7978846
      %v333 = vmul.f32 %v324, 0.7978846
      %v334 = vmul.f32 %v325, 0.7978846
      %v335 = vmul.f32 %v326, 0.7978846
      %v336 = vmul.f32 %v327, 0.7978846
      %v337 = vmul.f32 %v328, 0.7978846
      %v338 = vmul.f32 %v329, 0.7978846
      %v339 = vtanh.pop %v330
      %v340 = vtanh.pop %v331
      %v341 = vtanh.pop %v332
      %v342 = vtanh.pop %v333
      %v343 = vtanh.pop %v334
      %v344 = vtanh.pop %v335
      %v345 = vtanh.pop %v336
      %v346 = vtanh.pop %v337
      %v347 = vtanh.pop %v338
      %v348 = vadd.f32 %v339, 1.0
      %v349 = vadd.f32 %v340, 1.0
      %v350 = vadd.f32 %v341, 1.0
      %v351 = vadd.f32 %v342, 1.0
      %v352 = vadd.f32 %v343, 1.0
      %v353 = vadd.f32 %v344, 1.0
      %v354 = vadd.f32 %v345, 1.0
      %v355 = vadd.f32 %v346, 1.0
      %v356 = vadd.f32 %v347, 1.0
      %v357 = vmul.f32 %v285, %v348
      %v358 = vmul.f32 %v286, %v349
      %v359 = vmul.f32 %v287, %v350
      %v360 = vmul.f32 %v288, %v351
      %v361 = vmul.f32 %v289, %v352
      %v362 = vmul.f32 %v290, %v353
      %v363 = vmul.f32 %v291, %v354
      %v364 = vmul.f32 %v292, %v355
      %v365 = vmul.f32 %v293, %v356
      %366 = vst [vmem:[#allocation8] sm:$0xff] %v357
      %367 = vst [vmem:[#allocation8 + $0x8] sm:$0xff] %v358
      %368 = vst [vmem:[#allocation8 + $0x10] sm:$0xff] %v359
      %369 = vst [vmem:[#allocation8 + $0x18] sm:$0xff] %v360
      %370 = vst [vmem:[#allocation8 + $0x20] sm:$0xff] %v361
      %371 = vst [vmem:[#allocation8 + $0x28] sm:$0xff] %v362
      %372 = vst [vmem:[#allocation8 + $0x30] sm:$0xff] %v363
      %373 = vst [vmem:[#allocation8 + $0x38] sm:$0xff] %v364
      %374 = vst [vmem:[#allocation8 + $0x40] sm:$0xff] %v365
    $region29: #{tpu_custom_call.1} parent=1 // pred_fallthru
      _
    // Predicated region
    $region30: #{tpu_custom_call.1} parent=1 // pred_check
      _
    $region31: #{tpu_custom_call.1} parent=1 // pred_check_branch
      %376 = sbr.rel (0) target = $region33
    $region32: #{tpu_custom_call.1} parent=1 // pred_region
      %s378 = ssub.s32 1152, 1152
      %379 = vsyncadd [#allocation5], %s378
      %s380 = sshll.u32 [#allocation8], 4
      %s381 = int_to_ptr.vmem [resolvable:$true] %s380
      %386 = dma.vmem_to_hbm [thread:$0]  %s381, 1152, %s3, [#allocation5], 128, 128, 8
    $region33: #{tpu_custom_call.1} parent=1 // pred_fallthru
      _
    // Predicated region
    $region34: #{tpu_custom_call.1} parent=1 // pred_check
      _
    $region35: #{tpu_custom_call.1} parent=1 // pred_check_branch
      %388 = sbr.rel (0) target = $region37
    $region36: #{tpu_custom_call.1} parent=1 // pred_region
      %389 = dma.done [#allocation5], 1152
    $region37: #{tpu_custom_call.1} parent=1 // pred_fallthru
      _
    %390 = vsyncpa [#allocation4], 1
    %391 = vsyncpa [#allocation7], 1
    %392 = vsyncpa [#allocation5], 1

</llo_original>
